<compile_context>
chip_gen: v7x
topology: tpu7x:2x2x1
jax: 0.10.0
libtpu: 0.0.40
codegen_flags: <defaults>
</compile_context>

<pallas_src>
import functools

import numpy as np
import jax
import jax.numpy as jnp
from jax.experimental import pallas as pl
from jax.experimental.pallas import tpu as pltpu

WIN_SIZE = 7
WIN_SIGMA = 1.5
K1, K2 = 0.01, 0.03
DATA_RANGE = 1.0
C1 = (K1 * DATA_RANGE) ** 2
C2 = (K2 * DATA_RANGE) ** 2


def _gauss_1d(size, sigma):
    coords = np.arange(size, dtype=np.float64) - size // 2
    g = np.exp(-(coords ** 2) / (2.0 * sigma ** 2))
    g = g / g.sum()
    return tuple(float(v) for v in g)


GAUSS_WEIGHTS = _gauss_1d(WIN_SIZE, WIN_SIGMA)  # symmetric: w[t] == w[6-t]


def _sym_filter_pass(img, size, axis):
    """One 'valid'-style 7-tap pass along `axis` using XLU rolls.

    out[i] = sum_t w[t] * img[i + t]  (wrap-around values are masked later).
    Symmetric taps are paired (add first, multiply once): 6 rolls, 4 muls,
    6 adds instead of 6 rolls, 7 muls, 6 adds.
    """
    c = WIN_SIZE // 2  # 3
    out = GAUSS_WEIGHTS[c] * pltpu.roll(img, shift=size - c, axis=axis)
    # t = 0 pairs with t = 6 (shift 0 is the identity -> use img directly).
    out = out + GAUSS_WEIGHTS[0] * (
        img + pltpu.roll(img, shift=size - (WIN_SIZE - 1), axis=axis))
    for t in range(1, c):
        pair = (pltpu.roll(img, shift=size - t, axis=axis)
                + pltpu.roll(img, shift=size - (WIN_SIZE - 1 - t), axis=axis))
        out = out + GAUSS_WEIGHTS[t] * pair
    return out


def _ssim_kernel(x_ref, y_ref, o_ref, *, H, W, CB):
    """One grid step = CB channel images folded lane-wise into (H, CB*W)."""
    CBW = CB * W
    Hv = H - WIN_SIZE + 1
    Wv = W - WIN_SIZE + 1

    x = x_ref[0].astype(jnp.float32)          # (H, CB*W)
    y = y_ref[0].astype(jnp.float32)

    def gfilt(img):
        # Separable 7-tap Gaussian: lane pass then sublane pass.  Columns whose
        # 7-window crosses a channel boundary (col % W >= Wv) and rows >= Hv
        # pick up wrapped data; they are masked out of the mean below.
        acc = _sym_filter_pass(img, CBW, axis=1)
        return _sym_filter_pass(acc, H, axis=0)

    mu1 = gfilt(x)
    mu2 = gfilt(y)
    exx = gfilt(x * x)
    eyy = gfilt(y * y)
    exy = gfilt(x * y)

    mu1_sq = mu1 * mu1
    mu2_sq = mu2 * mu2
    mu1_mu2 = mu1 * mu2
    s1 = exx - mu1_sq
    s2 = eyy - mu2_sq
    s12 = exy - mu1_mu2

    # Single divide instead of two (algebraically identical).
    num = (2.0 * mu1_mu2 + C1) * (2.0 * s12 + C2)
    den = (mu1_sq + mu2_sq + C1) * (s1 + s2 + C2)
    ssim_map = num / den

    rows = jax.lax.broadcasted_iota(jnp.int32, (H, CBW), 0)
    cols = jax.lax.broadcasted_iota(jnp.int32, (H, CBW), 1)
    valid = (rows < Hv) & ((cols % W) < Wv)
    block_sum = jnp.sum(jnp.where(valid, ssim_map, 0.0))
    # Every channel contributes the same number (Hv*Wv) of valid pixels, so the
    # block mean equals the mean of the per-channel spatial means.
    block_mean = block_sum * (1.0 / float(CB * Hv * Wv))

    # Lane-dense, unmasked store of the partial result.
    o_ref[...] = jnp.full(o_ref.shape, block_mean, jnp.float32)


def _pick_channel_block(BC, H, W):
    """Largest divisor of BC whose f32 working block stays under a VMEM budget."""
    budget = 512 * 1024  # bytes per f32 channel-block (keeps ~15 temps well under VMEM limit)
    cb = 1
    for d in range(1, BC + 1):
        if BC % d == 0 and d * H * W * 4 <= budget:
            cb = d
    return cb


def ssim_loss_pallas(x, y):
    """x, y: (N, C, H, W). Returns scalar f32 loss = 1 - mean SSIM."""
    B, C, H, W = x.shape
    assert y.shape == x.shape
    BC = B * C

    itemsize = int(np.dtype(x.dtype).itemsize)
    cb = _pick_channel_block(BC, H, W)
    G = BC // cb
    CBW = cb * W

    # Layout plumbing outside the kernel (no forced f32 cast; kernel upcasts):
    # fold cb channel images side-by-side along the lane axis.
    def fold(a):
        return (a.reshape(G, cb, H, W)
                 .transpose(0, 2, 1, 3)
                 .reshape(G, H, CBW))

    x3 = fold(x)
    y3 = fold(y)

    kernel = functools.partial(_ssim_kernel, H=H, W=W, CB=cb)

    flops_per_block = H * CBW * (5 * 2 * (4 + 6) + 25)
    cost = pl.CostEstimate(
        flops=int(G * flops_per_block),
        transcendentals=int(G * H * CBW),          # the per-pixel divide
        bytes_accessed=int(2 * BC * H * W * itemsize + G * 8 * 128 * 4),
    )

    partial = pl.pallas_call(
        kernel,
        out_shape=jax.ShapeDtypeStruct((G * 8, 128), jnp.float32),
        grid=(G,),
        in_specs=[
            pl.BlockSpec((1, H, CBW), lambda i: (i, 0, 0)),
            pl.BlockSpec((1, H, CBW), lambda i: (i, 0, 0)),
        ],
        out_specs=pl.BlockSpec((8, 128), lambda i: (i, 0)),
        compiler_params=pltpu.CompilerParams(
            dimension_semantics=("parallel",),
            vmem_limit_bytes=32 * 1024 * 1024,
        ),
        cost_estimate=cost,
    )(x3, y3)

    # Each grid step wrote its block mean broadcast over an (8,128) slab; the
    # blocks cover equal numbers of channels, so a plain mean is the global one.
    ssim_val = jnp.mean(partial[:, 0])
    return 1.0 - ssim_val


def ssim_loss_ref(x, y):
    """Pure-JAX reference matching pytorch_msssim semantics."""
    B, C, H, W = x.shape
    Hv = H - WIN_SIZE + 1
    Wv = W - WIN_SIZE + 1
    w = jnp.asarray(GAUSS_WEIGHTS, jnp.float32)

    def gfilt(img):  # (B, C, H, W)
        acc = sum(w[k] * img[:, :, :, k:k + Wv] for k in range(WIN_SIZE))
        out = sum(w[k] * acc[:, :, k:k + Hv, :] for k in range(WIN_SIZE))
        return out

    mu1, mu2 = gfilt(x), gfilt(y)
    s1 = gfilt(x * x) - mu1 * mu1
    s2 = gfilt(y * y) - mu2 * mu2
    s12 = gfilt(x * y) - mu1 * mu2
    cs = (2 * s12 + C2) / (s1 + s2 + C2)
    ssim_map = ((2 * mu1 * mu2 + C1) / (mu1 * mu1 + mu2 * mu2 + C1)) * cs
    ssim_per_channel = jnp.mean(ssim_map.reshape(B, C, -1), axis=-1)
    return 1.0 - jnp.mean(ssim_per_channel)


if __name__ == "__main__":
    key = jax.random.PRNGKey(0)
    kx, ky = jax.random.split(key)
    # Module was configured with channel=3; images in [0, data_range=1].
    x = jax.random.uniform(kx, (2, 3, 16, 16), dtype=jnp.float32)
    y = jax.random.uniform(ky, (2, 3, 16, 16), dtype=jnp.float32)

    loss = jax.block_until_ready(ssim_loss_pallas(x, y))
    ref = jax.block_until_ready(ssim_loss_ref(x, y))

    np.testing.assert_allclose(np.asarray(loss), np.asarray(ref),
                               rtol=1e-5, atol=1e-5)
    print("KERNEL_OK")
</pallas_src>

<mosaic_0001>
module attributes {stable_mosaic.version = 11 : i64} {
  func.func @_ssim_kernel(%arg0: i32, %arg1: memref<1x16x96xf32, #tpu.memory_space<vmem>>, %arg2: memref<1x16x96xf32, #tpu.memory_space<vmem>>, %arg3: memref<8x128xf32, #tpu.memory_space<vmem>>) attributes {dimension_semantics = [#tpu.dimension_semantics<parallel>], iteration_bounds = array<i64: 1>, scalar_prefetch = 0 : i64, scratch_operands = 0 : i64, tpu.core_type = #tpu.core_type<tc>, window_params = [{transform_indices = @transform_0, window_bounds = array<i64: 1, 16, 96>}, {transform_indices = @transform_1, window_bounds = array<i64: 1, 16, 96>}, {transform_indices = @transform_2, window_bounds = array<i64: 8, 128>}]} {
    %c0 = arith.constant 0 : index
    %c0_0 = arith.constant 0 : index
    %c0_1 = arith.constant 0 : index
    %0 = vector.load %arg1[%c0, %c0_0, %c0_1] : memref<1x16x96xf32, #tpu.memory_space<vmem>>, vector<1x16x96xf32>
    %1 = vector.shape_cast %0 : vector<1x16x96xf32> to vector<16x96xf32>
    %c0_2 = arith.constant 0 : index
    %c0_3 = arith.constant 0 : index
    %c0_4 = arith.constant 0 : index
    %2 = vector.load %arg2[%c0_2, %c0_3, %c0_4] : memref<1x16x96xf32, #tpu.memory_space<vmem>>, vector<1x16x96xf32>
    %3 = vector.shape_cast %2 : vector<1x16x96xf32> to vector<16x96xf32>
    %c93_i32 = arith.constant 93 : i32
    %4 = tpu.dynamic_rotate %1 by %c93_i32 dim 1 : vector<16x96xf32>, i32 -> vector<16x96xf32>
    %cst = arith.constant 0.270682156 : f32
    %5 = vector.broadcast %cst : f32 to vector<16x96xf32>
    %6 = arith.mulf %5, %4 : vector<16x96xf32>
    %c90_i32 = arith.constant 90 : i32
    %7 = tpu.dynamic_rotate %1 by %c90_i32 dim 1 : vector<16x96xf32>, i32 -> vector<16x96xf32>
    %8 = arith.addf %1, %7 : vector<16x96xf32>
    %cst_5 = arith.constant 0.036632847 : f32
    %9 = vector.broadcast %cst_5 : f32 to vector<16x96xf32>
    %10 = arith.mulf %9, %8 : vector<16x96xf32>
    %11 = arith.addf %6, %10 : vector<16x96xf32>
    %c95_i32 = arith.constant 95 : i32
    %12 = tpu.dynamic_rotate %1 by %c95_i32 dim 1 : vector<16x96xf32>, i32 -> vector<16x96xf32>
    %c91_i32 = arith.constant 91 : i32
    %13 = tpu.dynamic_rotate %1 by %c91_i32 dim 1 : vector<16x96xf32>, i32 -> vector<16x96xf32>
    %14 = arith.addf %12, %13 : vector<16x96xf32>
    %cst_6 = arith.constant 0.111280762 : f32
    %15 = vector.broadcast %cst_6 : f32 to vector<16x96xf32>
    %16 = arith.mulf %15, %14 : vector<16x96xf32>
    %17 = arith.addf %11, %16 : vector<16x96xf32>
    %c94_i32 = arith.constant 94 : i32
    %18 = tpu.dynamic_rotate %1 by %c94_i32 dim 1 : vector<16x96xf32>, i32 -> vector<16x96xf32>
    %c92_i32 = arith.constant 92 : i32
    %19 = tpu.dynamic_rotate %1 by %c92_i32 dim 1 : vector<16x96xf32>, i32 -> vector<16x96xf32>
    %20 = arith.addf %18, %19 : vector<16x96xf32>
    %cst_7 = arith.constant 0.216745317 : f32
    %21 = vector.broadcast %cst_7 : f32 to vector<16x96xf32>
    %22 = arith.mulf %21, %20 : vector<16x96xf32>
    %23 = arith.addf %17, %22 : vector<16x96xf32>
    %c13_i32 = arith.constant 13 : i32
    %24 = tpu.dynamic_rotate %23 by %c13_i32 dim 0 : vector<16x96xf32>, i32 -> vector<16x96xf32>
    %cst_8 = arith.constant 0.270682156 : f32
    %25 = vector.broadcast %cst_8 : f32 to vector<16x96xf32>
    %26 = arith.mulf %25, %24 : vector<16x96xf32>
    %c10_i32 = arith.constant 10 : i32
    %27 = tpu.dynamic_rotate %23 by %c10_i32 dim 0 : vector<16x96xf32>, i32 -> vector<16x96xf32>
    %28 = arith.addf %23, %27 : vector<16x96xf32>
    %cst_9 = arith.constant 0.036632847 : f32
    %29 = vector.broadcast %cst_9 : f32 to vector<16x96xf32>
    %30 = arith.mulf %29, %28 : vector<16x96xf32>
    %31 = arith.addf %26, %30 : vector<16x96xf32>
    %c15_i32 = arith.constant 15 : i32
    %32 = tpu.dynamic_rotate %23 by %c15_i32 dim 0 : vector<16x96xf32>, i32 -> vector<16x96xf32>
    %c11_i32 = arith.constant 11 : i32
    %33 = tpu.dynamic_rotate %23 by %c11_i32 dim 0 : vector<16x96xf32>, i32 -> vector<16x96xf32>
    %34 = arith.addf %32, %33 : vector<16x96xf32>
    %cst_10 = arith.constant 0.111280762 : f32
    %35 = vector.broadcast %cst_10 : f32 to vector<16x96xf32>
    %36 = arith.mulf %35, %34 : vector<16x96xf32>
    %37 = arith.addf %31, %36 : vector<16x96xf32>
    %c14_i32 = arith.constant 14 : i32
    %38 = tpu.dynamic_rotate %23 by %c14_i32 dim 0 : vector<16x96xf32>, i32 -> vector<16x96xf32>
    %c12_i32 = arith.constant 12 : i32
    %39 = tpu.dynamic_rotate %23 by %c12_i32 dim 0 : vector<16x96xf32>, i32 -> vector<16x96xf32>
    %40 = arith.addf %38, %39 : vector<16x96xf32>
    %cst_11 = arith.constant 0.216745317 : f32
    %41 = vector.broadcast %cst_11 : f32 to vector<16x96xf32>
    %42 = arith.mulf %41, %40 : vector<16x96xf32>
    %43 = arith.addf %37, %42 : vector<16x96xf32>
    %c93_i32_12 = arith.constant 93 : i32
    %44 = tpu.dynamic_rotate %3 by %c93_i32_12 dim 1 : vector<16x96xf32>, i32 -> vector<16x96xf32>
    %cst_13 = arith.constant 0.270682156 : f32
    %45 = vector.broadcast %cst_13 : f32 to vector<16x96xf32>
    %46 = arith.mulf %45, %44 : vector<16x96xf32>
    %c90_i32_14 = arith.constant 90 : i32
    %47 = tpu.dynamic_rotate %3 by %c90_i32_14 dim 1 : vector<16x96xf32>, i32 -> vector<16x96xf32>
    %48 = arith.addf %3, %47 : vector<16x96xf32>
    %cst_15 = arith.constant 0.036632847 : f32
    %49 = vector.broadcast %cst_15 : f32 to vector<16x96xf32>
    %50 = arith.mulf %49, %48 : vector<16x96xf32>
    %51 = arith.addf %46, %50 : vector<16x96xf32>
    %c95_i32_16 = arith.constant 95 : i32
    %52 = tpu.dynamic_rotate %3 by %c95_i32_16 dim 1 : vector<16x96xf32>, i32 -> vector<16x96xf32>
    %c91_i32_17 = arith.constant 91 : i32
    %53 = tpu.dynamic_rotate %3 by %c91_i32_17 dim 1 : vector<16x96xf32>, i32 -> vector<16x96xf32>
    %54 = arith.addf %52, %53 : vector<16x96xf32>
    %cst_18 = arith.constant 0.111280762 : f32
    %55 = vector.broadcast %cst_18 : f32 to vector<16x96xf32>
    %56 = arith.mulf %55, %54 : vector<16x96xf32>
    %57 = arith.addf %51, %56 : vector<16x96xf32>
    %c94_i32_19 = arith.constant 94 : i32
    %58 = tpu.dynamic_rotate %3 by %c94_i32_19 dim 1 : vector<16x96xf32>, i32 -> vector<16x96xf32>
    %c92_i32_20 = arith.constant 92 : i32
    %59 = tpu.dynamic_rotate %3 by %c92_i32_20 dim 1 : vector<16x96xf32>, i32 -> vector<16x96xf32>
    %60 = arith.addf %58, %59 : vector<16x96xf32>
    %cst_21 = arith.constant 0.216745317 : f32
    %61 = vector.broadcast %cst_21 : f32 to vector<16x96xf32>
    %62 = arith.mulf %61, %60 : vector<16x96xf32>
    %63 = arith.addf %57, %62 : vector<16x96xf32>
    %c13_i32_22 = arith.constant 13 : i32
    %64 = tpu.dynamic_rotate %63 by %c13_i32_22 dim 0 : vector<16x96xf32>, i32 -> vector<16x96xf32>
    %cst_23 = arith.constant 0.270682156 : f32
    %65 = vector.broadcast %cst_23 : f32 to vector<16x96xf32>
    %66 = arith.mulf %65, %64 : vector<16x96xf32>
    %c10_i32_24 = arith.constant 10 : i32
    %67 = tpu.dynamic_rotate %63 by %c10_i32_24 dim 0 : vector<16x96xf32>, i32 -> vector<16x96xf32>
    %68 = arith.addf %63, %67 : vector<16x96xf32>
    %cst_25 = arith.constant 0.036632847 : f32
    %69 = vector.broadcast %cst_25 : f32 to vector<16x96xf32>
    %70 = arith.mulf %69, %68 : vector<16x96xf32>
    %71 = arith.addf %66, %70 : vector<16x96xf32>
    %c15_i32_26 = arith.constant 15 : i32
    %72 = tpu.dynamic_rotate %63 by %c15_i32_26 dim 0 : vector<16x96xf32>, i32 -> vector<16x96xf32>
    %c11_i32_27 = arith.constant 11 : i32
    %73 = tpu.dynamic_rotate %63 by %c11_i32_27 dim 0 : vector<16x96xf32>, i32 -> vector<16x96xf32>
    %74 = arith.addf %72, %73 : vector<16x96xf32>
    %cst_28 = arith.constant 0.111280762 : f32
    %75 = vector.broadcast %cst_28 : f32 to vector<16x96xf32>
    %76 = arith.mulf %75, %74 : vector<16x96xf32>
    %77 = arith.addf %71, %76 : vector<16x96xf32>
    %c14_i32_29 = arith.constant 14 : i32
    %78 = tpu.dynamic_rotate %63 by %c14_i32_29 dim 0 : vector<16x96xf32>, i32 -> vector<16x96xf32>
    %c12_i32_30 = arith.constant 12 : i32
    %79 = tpu.dynamic_rotate %63 by %c12_i32_30 dim 0 : vector<16x96xf32>, i32 -> vector<16x96xf32>
    %80 = arith.addf %78, %79 : vector<16x96xf32>
    %cst_31 = arith.constant 0.216745317 : f32
    %81 = vector.broadcast %cst_31 : f32 to vector<16x96xf32>
    %82 = arith.mulf %81, %80 : vector<16x96xf32>
    %83 = arith.addf %77, %82 : vector<16x96xf32>
    %84 = arith.mulf %1, %1 : vector<16x96xf32>
    %c93_i32_32 = arith.constant 93 : i32
    %85 = tpu.dynamic_rotate %84 by %c93_i32_32 dim 1 : vector<16x96xf32>, i32 -> vector<16x96xf32>
    %cst_33 = arith.constant 0.270682156 : f32
    %86 = vector.broadcast %cst_33 : f32 to vector<16x96xf32>
    %87 = arith.mulf %86, %85 : vector<16x96xf32>
    %c90_i32_34 = arith.constant 90 : i32
    %88 = tpu.dynamic_rotate %84 by %c90_i32_34 dim 1 : vector<16x96xf32>, i32 -> vector<16x96xf32>
    %89 = arith.addf %84, %88 : vector<16x96xf32>
    %cst_35 = arith.constant 0.036632847 : f32
    %90 = vector.broadcast %cst_35 : f32 to vector<16x96xf32>
    %91 = arith.mulf %90, %89 : vector<16x96xf32>
    %92 = arith.addf %87, %91 : vector<16x96xf32>
    %c95_i32_36 = arith.constant 95 : i32
    %93 = tpu.dynamic_rotate %84 by %c95_i32_36 dim 1 : vector<16x96xf32>, i32 -> vector<16x96xf32>
    %c91_i32_37 = arith.constant 91 : i32
    %94 = tpu.dynamic_rotate %84 by %c91_i32_37 dim 1 : vector<16x96xf32>, i32 -> vector<16x96xf32>
    %95 = arith.addf %93, %94 : vector<16x96xf32>
    %cst_38 = arith.constant 0.111280762 : f32
    %96 = vector.broadcast %cst_38 : f32 to vector<16x96xf32>
    %97 = arith.mulf %96, %95 : vector<16x96xf32>
    %98 = arith.addf %92, %97 : vector<16x96xf32>
    %c94_i32_39 = arith.constant 94 : i32
    %99 = tpu.dynamic_rotate %84 by %c94_i32_39 dim 1 : vector<16x96xf32>, i32 -> vector<16x96xf32>
    %c92_i32_40 = arith.constant 92 : i32
    %100 = tpu.dynamic_rotate %84 by %c92_i32_40 dim 1 : vector<16x96xf32>, i32 -> vector<16x96xf32>
    %101 = arith.addf %99, %100 : vector<16x96xf32>
    %cst_41 = arith.constant 0.216745317 : f32
    %102 = vector.broadcast %cst_41 : f32 to vector<16x96xf32>
    %103 = arith.mulf %102, %101 : vector<16x96xf32>
    %104 = arith.addf %98, %103 : vector<16x96xf32>
    %c13_i32_42 = arith.constant 13 : i32
    %105 = tpu.dynamic_rotate %104 by %c13_i32_42 dim 0 : vector<16x96xf32>, i32 -> vector<16x96xf32>
    %cst_43 = arith.constant 0.270682156 : f32
    %106 = vector.broadcast %cst_43 : f32 to vector<16x96xf32>
    %107 = arith.mulf %106, %105 : vector<16x96xf32>
    %c10_i32_44 = arith.constant 10 : i32
    %108 = tpu.dynamic_rotate %104 by %c10_i32_44 dim 0 : vector<16x96xf32>, i32 -> vector<16x96xf32>
    %109 = arith.addf %104, %108 : vector<16x96xf32>
    %cst_45 = arith.constant 0.036632847 : f32
    %110 = vector.broadcast %cst_45 : f32 to vector<16x96xf32>
    %111 = arith.mulf %110, %109 : vector<16x96xf32>
    %112 = arith.addf %107, %111 : vector<16x96xf32>
    %c15_i32_46 = arith.constant 15 : i32
    %113 = tpu.dynamic_rotate %104 by %c15_i32_46 dim 0 : vector<16x96xf32>, i32 -> vector<16x96xf32>
    %c11_i32_47 = arith.constant 11 : i32
    %114 = tpu.dynamic_rotate %104 by %c11_i32_47 dim 0 : vector<16x96xf32>, i32 -> vector<16x96xf32>
    %115 = arith.addf %113, %114 : vector<16x96xf32>
    %cst_48 = arith.constant 0.111280762 : f32
    %116 = vector.broadcast %cst_48 : f32 to vector<16x96xf32>
    %117 = arith.mulf %116, %115 : vector<16x96xf32>
    %118 = arith.addf %112, %117 : vector<16x96xf32>
    %c14_i32_49 = arith.constant 14 : i32
    %119 = tpu.dynamic_rotate %104 by %c14_i32_49 dim 0 : vector<16x96xf32>, i32 -> vector<16x96xf32>
    %c12_i32_50 = arith.constant 12 : i32
    %120 = tpu.dynamic_rotate %104 by %c12_i32_50 dim 0 : vector<16x96xf32>, i32 -> vector<16x96xf32>
    %121 = arith.addf %119, %120 : vector<16x96xf32>
    %cst_51 = arith.constant 0.216745317 : f32
    %122 = vector.broadcast %cst_51 : f32 to vector<16x96xf32>
    %123 = arith.mulf %122, %121 : vector<16x96xf32>
    %124 = arith.addf %118, %123 : vector<16x96xf32>
    %125 = arith.mulf %3, %3 : vector<16x96xf32>
    %c93_i32_52 = arith.constant 93 : i32
    %126 = tpu.dynamic_rotate %125 by %c93_i32_52 dim 1 : vector<16x96xf32>, i32 -> vector<16x96xf32>
    %cst_53 = arith.constant 0.270682156 : f32
    %127 = vector.broadcast %cst_53 : f32 to vector<16x96xf32>
    %128 = arith.mulf %127, %126 : vector<16x96xf32>
    %c90_i32_54 = arith.constant 90 : i32
    %129 = tpu.dynamic_rotate %125 by %c90_i32_54 dim 1 : vector<16x96xf32>, i32 -> vector<16x96xf32>
    %130 = arith.addf %125, %129 : vector<16x96xf32>
    %cst_55 = arith.constant 0.036632847 : f32
    %131 = vector.broadcast %cst_55 : f32 to vector<16x96xf32>
    %132 = arith.mulf %131, %130 : vector<16x96xf32>
    %133 = arith.addf %128, %132 : vector<16x96xf32>
    %c95_i32_56 = arith.constant 95 : i32
    %134 = tpu.dynamic_rotate %125 by %c95_i32_56 dim 1 : vector<16x96xf32>, i32 -> vector<16x96xf32>
    %c91_i32_57 = arith.constant 91 : i32
    %135 = tpu.dynamic_rotate %125 by %c91_i32_57 dim 1 : vector<16x96xf32>, i32 -> vector<16x96xf32>
    %136 = arith.addf %134, %135 : vector<16x96xf32>
    %cst_58 = arith.constant 0.111280762 : f32
    %137 = vector.broadcast %cst_58 : f32 to vector<16x96xf32>
    %138 = arith.mulf %137, %136 : vector<16x96xf32>
    %139 = arith.addf %133, %138 : vector<16x96xf32>
    %c94_i32_59 = arith.constant 94 : i32
    %140 = tpu.dynamic_rotate %125 by %c94_i32_59 dim 1 : vector<16x96xf32>, i32 -> vector<16x96xf32>
    %c92_i32_60 = arith.constant 92 : i32
    %141 = tpu.dynamic_rotate %125 by %c92_i32_60 dim 1 : vector<16x96xf32>, i32 -> vector<16x96xf32>
    %142 = arith.addf %140, %141 : vector<16x96xf32>
    %cst_61 = arith.constant 0.216745317 : f32
    %143 = vector.broadcast %cst_61 : f32 to vector<16x96xf32>
    %144 = arith.mulf %143, %142 : vector<16x96xf32>
    %145 = arith.addf %139, %144 : vector<16x96xf32>
    %c13_i32_62 = arith.constant 13 : i32
    %146 = tpu.dynamic_rotate %145 by %c13_i32_62 dim 0 : vector<16x96xf32>, i32 -> vector<16x96xf32>
    %cst_63 = arith.constant 0.270682156 : f32
    %147 = vector.broadcast %cst_63 : f32 to vector<16x96xf32>
    %148 = arith.mulf %147, %146 : vector<16x96xf32>
    %c10_i32_64 = arith.constant 10 : i32
    %149 = tpu.dynamic_rotate %145 by %c10_i32_64 dim 0 : vector<16x96xf32>, i32 -> vector<16x96xf32>
    %150 = arith.addf %145, %149 : vector<16x96xf32>
    %cst_65 = arith.constant 0.036632847 : f32
    %151 = vector.broadcast %cst_65 : f32 to vector<16x96xf32>
    %152 = arith.mulf %151, %150 : vector<16x96xf32>
    %153 = arith.addf %148, %152 : vector<16x96xf32>
    %c15_i32_66 = arith.constant 15 : i32
    %154 = tpu.dynamic_rotate %145 by %c15_i32_66 dim 0 : vector<16x96xf32>, i32 -> vector<16x96xf32>
    %c11_i32_67 = arith.constant 11 : i32
    %155 = tpu.dynamic_rotate %145 by %c11_i32_67 dim 0 : vector<16x96xf32>, i32 -> vector<16x96xf32>
    %156 = arith.addf %154, %155 : vector<16x96xf32>
    %cst_68 = arith.constant 0.111280762 : f32
    %157 = vector.broadcast %cst_68 : f32 to vector<16x96xf32>
    %158 = arith.mulf %157, %156 : vector<16x96xf32>
    %159 = arith.addf %153, %158 : vector<16x96xf32>
    %c14_i32_69 = arith.constant 14 : i32
    %160 = tpu.dynamic_rotate %145 by %c14_i32_69 dim 0 : vector<16x96xf32>, i32 -> vector<16x96xf32>
    %c12_i32_70 = arith.constant 12 : i32
    %161 = tpu.dynamic_rotate %145 by %c12_i32_70 dim 0 : vector<16x96xf32>, i32 -> vector<16x96xf32>
    %162 = arith.addf %160, %161 : vector<16x96xf32>
    %cst_71 = arith.constant 0.216745317 : f32
    %163 = vector.broadcast %cst_71 : f32 to vector<16x96xf32>
    %164 = arith.mulf %163, %162 : vector<16x96xf32>
    %165 = arith.addf %159, %164 : vector<16x96xf32>
    %166 = arith.mulf %1, %3 : vector<16x96xf32>
    %c93_i32_72 = arith.constant 93 : i32
    %167 = tpu.dynamic_rotate %166 by %c93_i32_72 dim 1 : vector<16x96xf32>, i32 -> vector<16x96xf32>
    %cst_73 = arith.constant 0.270682156 : f32
    %168 = vector.broadcast %cst_73 : f32 to vector<16x96xf32>
    %169 = arith.mulf %168, %167 : vector<16x96xf32>
    %c90_i32_74 = arith.constant 90 : i32
    %170 = tpu.dynamic_rotate %166 by %c90_i32_74 dim 1 : vector<16x96xf32>, i32 -> vector<16x96xf32>
    %171 = arith.addf %166, %170 : vector<16x96xf32>
    %cst_75 = arith.constant 0.036632847 : f32
    %172 = vector.broadcast %cst_75 : f32 to vector<16x96xf32>
    %173 = arith.mulf %172, %171 : vector<16x96xf32>
    %174 = arith.addf %169, %173 : vector<16x96xf32>
    %c95_i32_76 = arith.constant 95 : i32
    %175 = tpu.dynamic_rotate %166 by %c95_i32_76 dim 1 : vector<16x96xf32>, i32 -> vector<16x96xf32>
    %c91_i32_77 = arith.constant 91 : i32
    %176 = tpu.dynamic_rotate %166 by %c91_i32_77 dim 1 : vector<16x96xf32>, i32 -> vector<16x96xf32>
    %177 = arith.addf %175, %176 : vector<16x96xf32>
    %cst_78 = arith.constant 0.111280762 : f32
    %178 = vector.broadcast %cst_78 : f32 to vector<16x96xf32>
    %179 = arith.mulf %178, %177 : vector<16x96xf32>
    %180 = arith.addf %174, %179 : vector<16x96xf32>
    %c94_i32_79 = arith.constant 94 : i32
    %181 = tpu.dynamic_rotate %166 by %c94_i32_79 dim 1 : vector<16x96xf32>, i32 -> vector<16x96xf32>
    %c92_i32_80 = arith.constant 92 : i32
    %182 = tpu.dynamic_rotate %166 by %c92_i32_80 dim 1 : vector<16x96xf32>, i32 -> vector<16x96xf32>
    %183 = arith.addf %181, %182 : vector<16x96xf32>
    %cst_81 = arith.constant 0.216745317 : f32
    %184 = vector.broadcast %cst_81 : f32 to vector<16x96xf32>
    %185 = arith.mulf %184, %183 : vector<16x96xf32>
    %186 = arith.addf %180, %185 : vector<16x96xf32>
    %c13_i32_82 = arith.constant 13 : i32
    %187 = tpu.dynamic_rotate %186 by %c13_i32_82 dim 0 : vector<16x96xf32>, i32 -> vector<16x96xf32>
    %cst_83 = arith.constant 0.270682156 : f32
    %188 = vector.broadcast %cst_83 : f32 to vector<16x96xf32>
    %189 = arith.mulf %188, %187 : vector<16x96xf32>
    %c10_i32_84 = arith.constant 10 : i32
    %190 = tpu.dynamic_rotate %186 by %c10_i32_84 dim 0 : vector<16x96xf32>, i32 -> vector<16x96xf32>
    %191 = arith.addf %186, %190 : vector<16x96xf32>
    %cst_85 = arith.constant 0.036632847 : f32
    %192 = vector.broadcast %cst_85 : f32 to vector<16x96xf32>
    %193 = arith.mulf %192, %191 : vector<16x96xf32>
    %194 = arith.addf %189, %193 : vector<16x96xf32>
    %c15_i32_86 = arith.constant 15 : i32
    %195 = tpu.dynamic_rotate %186 by %c15_i32_86 dim 0 : vector<16x96xf32>, i32 -> vector<16x96xf32>
    %c11_i32_87 = arith.constant 11 : i32
    %196 = tpu.dynamic_rotate %186 by %c11_i32_87 dim 0 : vector<16x96xf32>, i32 -> vector<16x96xf32>
    %197 = arith.addf %195, %196 : vector<16x96xf32>
    %cst_88 = arith.constant 0.111280762 : f32
    %198 = vector.broadcast %cst_88 : f32 to vector<16x96xf32>
    %199 = arith.mulf %198, %197 : vector<16x96xf32>
    %200 = arith.addf %194, %199 : vector<16x96xf32>
    %c14_i32_89 = arith.constant 14 : i32
    %201 = tpu.dynamic_rotate %186 by %c14_i32_89 dim 0 : vector<16x96xf32>, i32 -> vector<16x96xf32>
    %c12_i32_90 = arith.constant 12 : i32
    %202 = tpu.dynamic_rotate %186 by %c12_i32_90 dim 0 : vector<16x96xf32>, i32 -> vector<16x96xf32>
    %203 = arith.addf %201, %202 : vector<16x96xf32>
    %cst_91 = arith.constant 0.216745317 : f32
    %204 = vector.broadcast %cst_91 : f32 to vector<16x96xf32>
    %205 = arith.mulf %204, %203 : vector<16x96xf32>
    %206 = arith.addf %200, %205 : vector<16x96xf32>
    %207 = arith.mulf %43, %43 : vector<16x96xf32>
    %208 = arith.mulf %83, %83 : vector<16x96xf32>
    %209 = arith.mulf %43, %83 : vector<16x96xf32>
    %210 = arith.subf %124, %207 : vector<16x96xf32>
    %211 = arith.subf %165, %208 : vector<16x96xf32>
    %212 = arith.subf %206, %209 : vector<16x96xf32>
    %cst_92 = arith.constant 2.000000e+00 : f32
    %213 = vector.broadcast %cst_92 : f32 to vector<16x96xf32>
    %214 = arith.mulf %213, %209 : vector<16x96xf32>
    %cst_93 = arith.constant 9.99999974E-5 : f32
    %215 = vector.broadcast %cst_93 : f32 to vector<16x96xf32>
    %216 = arith.addf %214, %215 : vector<16x96xf32>
    %cst_94 = arith.constant 2.000000e+00 : f32
    %217 = vector.broadcast %cst_94 : f32 to vector<16x96xf32>
    %218 = arith.mulf %217, %212 : vector<16x96xf32>
    %cst_95 = arith.constant 8.99999984E-4 : f32
    %219 = vector.broadcast %cst_95 : f32 to vector<16x96xf32>
    %220 = arith.addf %218, %219 : vector<16x96xf32>
    %221 = arith.mulf %216, %220 : vector<16x96xf32>
    %222 = arith.addf %207, %208 : vector<16x96xf32>
    %cst_96 = arith.constant 9.99999974E-5 : f32
    %223 = vector.broadcast %cst_96 : f32 to vector<16x96xf32>
    %224 = arith.addf %222, %223 : vector<16x96xf32>
    %225 = arith.addf %210, %211 : vector<16x96xf32>
    %cst_97 = arith.constant 8.99999984E-4 : f32
    %226 = vector.broadcast %cst_97 : f32 to vector<16x96xf32>
    %227 = arith.addf %225, %226 : vector<16x96xf32>
    %228 = arith.mulf %224, %227 : vector<16x96xf32>
    %229 = arith.divf %221, %228 : vector<16x96xf32>
    %230 = tpu.iota {dimensions = array<i32: 0>} : vector<16x96xi32>
    %231 = tpu.iota {dimensions = array<i32: 1>} : vector<16x96xi32>
    %c10_i32_98 = arith.constant 10 : i32
    %232 = vector.broadcast %c10_i32_98 : i32 to vector<16x96xi32>
    %233 = arith.cmpi slt, %230, %232 : vector<16x96xi32>
    %c16_i32 = arith.constant 16 : i32
    %c0_i32 = arith.constant 0 : i32
    %234 = arith.cmpi eq, %c16_i32, %c0_i32 : i32
    %c1_i32 = arith.constant 1 : i32
    %235 = arith.select %234, %c1_i32, %c16_i32 : i32
    %236 = vector.broadcast %235 : i32 to vector<16x96xi32>
    %237 = arith.remsi %231, %236 : vector<16x96xi32>
    %c0_i32_99 = arith.constant 0 : i32
    %238 = vector.broadcast %c0_i32_99 : i32 to vector<16x96xi32>
    %239 = arith.cmpi ne, %237, %238 : vector<16x96xi32>
    %c0_i32_100 = arith.constant 0 : i32
    %240 = vector.broadcast %c0_i32_100 : i32 to vector<16x96xi32>
    %241 = arith.cmpi slt, %237, %240 : vector<16x96xi32>
    %c0_i32_101 = arith.constant 0 : i32
    %242 = arith.cmpi slt, %235, %c0_i32_101 : i32
    %243 = vector.broadcast %242 : i1 to vector<16x96xi1>
    %244 = vector.broadcast %243 : vector<16x96xi1> to vector<16x96xi1>
    %245 = arith.xori %241, %244 : vector<16x96xi1>
    %246 = arith.andi %245, %239 : vector<16x96xi1>
    %247 = vector.broadcast %235 : i32 to vector<16x96xi32>
    %248 = arith.addi %237, %247 : vector<16x96xi32>
    %249 = arith.select %246, %248, %237 : vector<16x96xi1>, vector<16x96xi32>
    %c10_i32_102 = arith.constant 10 : i32
    %250 = vector.broadcast %c10_i32_102 : i32 to vector<16x96xi32>
    %251 = arith.cmpi slt, %249, %250 : vector<16x96xi32>
    %252 = arith.andi %233, %251 : vector<16x96xi1>
    %cst_103 = arith.constant 0.000000e+00 : f32
    %253 = vector.broadcast %cst_103 : f32 to vector<16x96xf32>
    %254 = arith.select %252, %229, %253 : vector<16x96xi1>, vector<16x96xf32>
    %255 = vector.shape_cast %254 : vector<16x96xf32> to vector<1x16x96xf32>
    %cst_104 = arith.constant dense<0.000000e+00> : vector<1xf32>
    %256 = vector.multi_reduction <add>, %255, %cst_104 [1, 2] : vector<1x16x96xf32> to vector<1xf32>
    %257 = vector.shape_cast %256 : vector<1xf32> to vector<1x1x1xf32>
    %258 = vector.extract %257[0, 0, 0] : f32 from vector<1x1x1xf32>
    %cst_105 = arith.constant 0.00166666671 : f32
    %259 = arith.mulf %258, %cst_105 : f32
    %260 = vector.broadcast %259 : f32 to vector<8x128xf32>
    %c0_106 = arith.constant 0 : index
    %c0_107 = arith.constant 0 : index
    %261 = vector.load %arg3[%c0_106, %c0_107] : memref<8x128xf32, #tpu.memory_space<vmem>>, vector<8x128xf32>
    tpu.vector_store %arg3[%c0_106, %c0_107], %260 {strides = array<i32>} : memref<8x128xf32, #tpu.memory_space<vmem>>, vector<8x128xf32>,
    return
  }
  func.func @transform_0(%arg0: i32) -> (i32, i32, i32) {
    %c0_i32 = arith.constant 0 : i32
    %c0_i32_0 = arith.constant 0 : i32
    %c0_i32_1 = arith.constant 0 : i32
    return %arg0, %c0_i32, %c0_i32_0 : i32, i32, i32
  }
  func.func @transform_1(%arg0: i32) -> (i32, i32, i32) {
    %c0_i32 = arith.constant 0 : i32
    %c0_i32_0 = arith.constant 0 : i32
    %c0_i32_1 = arith.constant 0 : i32
    return %arg0, %c0_i32, %c0_i32_0 : i32, i32, i32
  }
  func.func @transform_2(%arg0: i32) -> (i32, i32) {
    %c0_i32 = arith.constant 0 : i32
    %c0_i32_0 = arith.constant 0 : i32
    return %arg0, %c0_i32 : i32, i32
  }
}

</mosaic_0001>

<llo_original>
// kernel: tpu_custom_call.1
$region0: #{tpu_custom_call.1}
  #allocation0 [shape = 'u32[]', space=smem, size = 0x4, offset = 0x4, fixed_abs, tag = 'smem constant byte address 0x4 - core index']
  #allocation1 [shape = 'u32[144,128]{1,0:T(1,128)}', space=vmem, size = 0x12000, scoped, tag = 'internal scratch']
  %s0 = inlined_call_operand.hbm [shape: f32[1,16,96], index: 0, kind: input, shape index: {}]
  %s1 = inlined_call_operand.hbm [shape: f32[1,16,96], index: 1, kind: input, shape index: {}]
  %s2 = inlined_call_operand.hbm [shape: f32[8,128], index: 2, kind: output, shape index: {}]
  %s3 = sld [smem:[#allocation0]]
  $region26: #{tpu_custom_call.1} parent=0
    _
  %s5 = ssub.s32 1, %s3
  %s6 = scalar_select 0, %s5, %s3
  $region1: #{tpu_custom_call.1} parent=0
    #allocation2 [shape = 'u8[8192]{0}', space=vmem, size = 0x2000, scoped, tag = 'input window, operand 0, single buffered']
    #allocation3 [shape = 's32[1]{0}', space=sflag, size = 0x4, scoped, tag = 'scoped memory for tpu_custom_call.1']
    #allocation4 [shape = 's32[1]{0}', space=sflag, size = 0x4, scoped, tag = 'scoped memory for tpu_custom_call.1']
    #allocation5 [shape = 'u8[8192]{0}', space=vmem, size = 0x2000, scoped, tag = 'input window, operand 1, single buffered']
    #allocation6 [shape = 's32[1]{0}', space=sflag, size = 0x4, scoped, tag = 'scoped memory for tpu_custom_call.1']
    #allocation7 [shape = 'u8[4096]{0}', space=vmem, size = 0x1000, scoped, tag = 'output window, operand 0, single buffered']
    %7 = vsyncpa [#allocation3], 0
    %8 = vsyncpa [#allocation6], 0
    %9 = vsyncpa [#allocation4], 0
    // Predicated region
    $region2: #{tpu_custom_call.1} parent=1 // pred_check
      _
    $region3: #{tpu_custom_call.1} parent=1 // pred_check_branch
      %11 = sbr.rel (0) target = $region5
    $region4: #{tpu_custom_call.1} parent=1 // pred_region
      %s13 = ssub.s32 256, 256
      %14 = vsyncadd [#allocation3], %s13
      %s15 = sshll.u32 [#allocation2], 4
      %s16 = int_to_ptr.vmem [resolvable:$true] %s15
      %21 = dma.hbm_to_vmem [thread:$0]  %s0, 256, %s16, [#allocation3], 128, 128, 8
    $region5: #{tpu_custom_call.1} parent=1 // pred_fallthru
      _
    // Predicated region
    $region6: #{tpu_custom_call.1} parent=1 // pred_check
      _
    $region7: #{tpu_custom_call.1} parent=1 // pred_check_branch
      %23 = sbr.rel (0) target = $region9
    $region8: #{tpu_custom_call.1} parent=1 // pred_region
      %s25 = ssub.s32 256, 256
      %26 = vsyncadd [#allocation6], %s25
      %s27 = sshll.u32 [#allocation5], 4
      %s28 = int_to_ptr.vmem [resolvable:$true] %s27
      %33 = dma.hbm_to_vmem [thread:$0]  %s1, 256, %s28, [#allocation6], 128, 128, 8
    $region9: #{tpu_custom_call.1} parent=1 // pred_fallthru
      _
    // Predicated region
    $region10: #{tpu_custom_call.1} parent=1 // pred_check
      _
    $region11: #{tpu_custom_call.1} parent=1 // pred_check_branch
      %35 = sbr.rel (0) target = $region13
    $region12: #{tpu_custom_call.1} parent=1 // pred_region
      %36 = dma.done [#allocation3], 256
    $region13: #{tpu_custom_call.1} parent=1 // pred_fallthru
      _
    // Predicated region
    $region14: #{tpu_custom_call.1} parent=1 // pred_check
      _
    $region15: #{tpu_custom_call.1} parent=1 // pred_check_branch
      %38 = sbr.rel (0) target = $region17
    $region16: #{tpu_custom_call.1} parent=1 // pred_region
      %39 = dma.done [#allocation6], 256
    $region17: #{tpu_custom_call.1} parent=1 // pred_fallthru
      _
    %v40 = vld [vmem:[#allocation2] sm:$0xff]
    %v41 = vld [vmem:[#allocation2 + $0x8] sm:$0xff]
    %v42 = vld [vmem:[#allocation5] sm:$0xff]
    %v43 = vld [vmem:[#allocation5 + $0x8] sm:$0xff]
    %vm44 = vcmask 1048320
    %45 = vrot.lane.b32.xlu0 %v40, 96
    %v46 = vpop.permute.xlu0 %45
    %v47 = vsel %vm44, %v46, %v40
    %48 = vrot.lane.b32.xlu0 %v41, 96
    %v49 = vpop.permute.xlu0 %48
    %v50 = vsel %vm44, %v49, %v41
    %51 = vrot.lane.b32.xlu0 %v47, 96
    %v52 = vpop.permute.xlu0 %51
    %53 = vrot.lane.b32.xlu0 %v50, 96
    %v54 = vpop.permute.xlu0 %53
    %v55 = vsel %vm44, %v52, %v40
    %v56 = vsel %vm44, %v54, %v41
    %v57 = vmul.f32 %v55, 0.27068216
    %v58 = vmul.f32 %v56, 0.27068216
    %61 = vrot.lane.b32.xlu0 %v55, 122
    %v62 = vpop.permute.xlu0 %61
    %63 = vrot.lane.b32.xlu0 %v56, 122
    %v64 = vpop.permute.xlu0 %63
    %v67 = vadd.f32 %v40, %v62
    %v68 = vadd.f32 %v41, %v64
    %v69 = vmul.f32 %v67, 0.036632847
    %v70 = vmul.f32 %v68, 0.036632847
    %73 = vrot.lane.b32.xlu0 %v69, 3
    %v74 = vpop.permute.xlu0 %73
    %75 = vrot.lane.b32.xlu0 %v70, 3
    %v76 = vpop.permute.xlu0 %75
    %v79 = vadd.f32 %v57, %v74
    %v80 = vadd.f32 %v58, %v76
    %81 = vrot.lane.b32.xlu0 %v55, 124
    %v82 = vpop.permute.xlu0 %81
    %83 = vrot.lane.b32.xlu0 %v56, 124
    %v84 = vpop.permute.xlu0 %83
    %v87 = vadd.f32 %v55, %v82
    %v88 = vadd.f32 %v56, %v84
    %v89 = vmul.f32 %v87, 0.11128076
    %v90 = vmul.f32 %v88, 0.11128076
    %93 = vrot.lane.b32.xlu0 %v89, 2
    %v94 = vpop.permute.xlu0 %93
    %95 = vrot.lane.b32.xlu0 %v90, 2
    %v96 = vpop.permute.xlu0 %95
    %v99 = vadd.f32 %v79, %v94
    %v100 = vadd.f32 %v80, %v96
    %101 = vrot.lane.b32.xlu0 %v55, 126
    %v102 = vpop.permute.xlu0 %101
    %103 = vrot.lane.b32.xlu0 %v56, 126
    %v104 = vpop.permute.xlu0 %103
    %v107 = vadd.f32 %v55, %v102
    %v108 = vadd.f32 %v56, %v104
    %v109 = vmul.f32 %v107, 0.21674532
    %v110 = vmul.f32 %v108, 0.21674532
    %113 = vrot.lane.b32.xlu0 %v109, 1
    %v114 = vpop.permute.xlu0 %113
    %115 = vrot.lane.b32.xlu0 %v110, 1
    %v116 = vpop.permute.xlu0 %115
    %v119 = vadd.f32 %v99, %v114
    %v120 = vadd.f32 %v100, %v116
    %123 = vrot.lane.b32.xlu0 %v119, 125
    %v124 = vpop.permute.xlu0 %123
    %125 = vrot.lane.b32.xlu0 %v120, 125
    %v126 = vpop.permute.xlu0 %125
    %v129 = vrot.slane %v124, 3
    %v130 = vrot.slane %v126, 3
    %v131 = vlaneseq
    %v132 = vshrl.u32 %v131, 7
    %vm133 = vcmp.lt.s32.totalorder %v132, 5
    %v134 = vsel %vm133, %v129, %v130
    %v135 = vsel %vm133, %v130, %v129
    %v136 = vmul.f32 %v134, 0.27068216
    %v137 = vmul.f32 %v135, 0.27068216
    %v138 = vrot.slane %v124, 6
    %v139 = vrot.slane %v126, 6
    %vm140 = vcmp.lt.s32.totalorder %v132, 2
    %v141 = vsel %vm140, %v138, %v139
    %v142 = vsel %vm140, %v139, %v138
    %145 = vrot.lane.b32.xlu0 %v141, 3
    %v146 = vpop.permute.xlu0 %145
    %147 = vrot.lane.b32.xlu0 %v142, 3
    %v148 = vpop.permute.xlu0 %147
    %v151 = vadd.f32 %v119, %v146
    %v152 = vadd.f32 %v120, %v148
    %v153 = vmul.f32 %v151, 0.036632847
    %v154 = vmul.f32 %v152, 0.036632847
    %157 = vrot.lane.b32.xlu0 %v153, 125
    %v158 = vpop.permute.xlu0 %157
    %159 = vrot.lane.b32.xlu0 %v154, 125
    %v160 = vpop.permute.xlu0 %159
    %v163 = vadd.f32 %v136, %v158
    %v164 = vadd.f32 %v137, %v160
    %v165 = vrot.slane %v124, 1
    %v166 = vrot.slane %v126, 1
    %vm167 = vcmp.lt.s32.totalorder %v132, 7
    %v168 = vsel %vm167, %v165, %v166
    %v169 = vsel %vm167, %v166, %v165
    %v170 = vrot.slane %v124, 5
    %v171 = vrot.slane %v126, 5
    %vm172 = vcmp.lt.s32.totalorder %v132, 3
    %v173 = vsel %vm172, %v170, %v171
    %v174 = vsel %vm172, %v171, %v170
    %v175 = vadd.f32 %v168, %v173
    %v176 = vadd.f32 %v169, %v174
    %v177 = vmul.f32 %v175, 0.11128076
    %v178 = vmul.f32 %v176, 0.11128076
    %v179 = vadd.f32 %v163, %v177
    %v180 = vadd.f32 %v164, %v178
    %v181 = vrot.slane %v124, 2
    %v182 = vrot.slane %v126, 2
    %vm183 = vcmp.lt.s32.totalorder %v132, 6
    %v184 = vsel %vm183, %v181, %v182
    %v185 = vsel %vm183, %v182, %v181
    %v186 = vrot.slane %v124, 4
    %v187 = vrot.slane %v126, 4
    %vm188 = vcmp.lt.s32.totalorder %v132, 4
    %v189 = vsel %vm188, %v186, %v187
    %v190 = vsel %vm188, %v187, %v186
    %v191 = vadd.f32 %v184, %v189
    %v192 = vadd.f32 %v185, %v190
    %v193 = vmul.f32 %v191, 0.21674532
    %v194 = vmul.f32 %v192, 0.21674532
    %v195 = vadd.f32 %v179, %v193
    %v196 = vadd.f32 %v180, %v194
    %197 = vrot.lane.b32.xlu0 %v42, 96
    %v198 = vpop.permute.xlu0 %197
    %v199 = vsel %vm44, %v198, %v42
    %200 = vrot.lane.b32.xlu0 %v43, 96
    %v201 = vpop.permute.xlu0 %200
    %v202 = vsel %vm44, %v201, %v43
    %203 = vrot.lane.b32.xlu0 %v199, 96
    %v204 = vpop.permute.xlu0 %203
    %205 = vrot.lane.b32.xlu0 %v202, 96
    %v206 = vpop.permute.xlu0 %205
    %v207 = vsel %vm44, %v204, %v42
    %v208 = vsel %vm44, %v206, %v43
    %v209 = vmul.f32 %v207, 0.27068216
    %v210 = vmul.f32 %v208, 0.27068216
    %213 = vrot.lane.b32.xlu0 %v207, 122
    %v214 = vpop.permute.xlu0 %213
    %215 = vrot.lane.b32.xlu0 %v208, 122
    %v216 = vpop.permute.xlu0 %215
    %v219 = vadd.f32 %v42, %v214
    %v220 = vadd.f32 %v43, %v216
    %v221 = vmul.f32 %v219, 0.036632847
    %v222 = vmul.f32 %v220, 0.036632847
    %225 = vrot.lane.b32.xlu0 %v221, 3
    %v226 = vpop.permute.xlu0 %225
    %227 = vrot.lane.b32.xlu0 %v222, 3
    %v228 = vpop.permute.xlu0 %227
    %v231 = vadd.f32 %v209, %v226
    %v232 = vadd.f32 %v210, %v228
    %233 = vrot.lane.b32.xlu0 %v207, 124
    %v234 = vpop.permute.xlu0 %233
    %235 = vrot.lane.b32.xlu0 %v208, 124
    %v236 = vpop.permute.xlu0 %235
    %v239 = vadd.f32 %v207, %v234
    %v240 = vadd.f32 %v208, %v236
    %v241 = vmul.f32 %v239, 0.11128076
    %v242 = vmul.f32 %v240, 0.11128076
    %245 = vrot.lane.b32.xlu0 %v241, 2
    %v246 = vpop.permute.xlu0 %245
    %247 = vrot.lane.b32.xlu0 %v242, 2
    %v248 = vpop.permute.xlu0 %247
    %v251 = vadd.f32 %v231, %v246
    %v252 = vadd.f32 %v232, %v248
    %253 = vrot.lane.b32.xlu0 %v207, 126
    %v254 = vpop.permute.xlu0 %253
    %255 = vrot.lane.b32.xlu0 %v208, 126
    %v256 = vpop.permute.xlu0 %255
    %v259 = vadd.f32 %v207, %v254
    %v260 = vadd.f32 %v208, %v256
    %v261 = vmul.f32 %v259, 0.21674532
    %v262 = vmul.f32 %v260, 0.21674532
    %265 = vrot.lane.b32.xlu0 %v261, 1
    %v266 = vpop.permute.xlu0 %265
    %267 = vrot.lane.b32.xlu0 %v262, 1
    %v268 = vpop.permute.xlu0 %267
    %v271 = vadd.f32 %v251, %v266
    %v272 = vadd.f32 %v252, %v268
    %275 = vrot.lane.b32.xlu0 %v271, 125
    %v276 = vpop.permute.xlu0 %275
    %277 = vrot.lane.b32.xlu0 %v272, 125
    %v278 = vpop.permute.xlu0 %277
    %v281 = vrot.slane %v276, 3
    %v282 = vrot.slane %v278, 3
    %v283 = vsel %vm133, %v281, %v282
    %v284 = vsel %vm133, %v282, %v281
    %v285 = vmul.f32 %v283, 0.27068216
    %v286 = vmul.f32 %v284, 0.27068216
    %v287 = vrot.slane %v276, 6
    %v288 = vrot.slane %v278, 6
    %v289 = vsel %vm140, %v287, %v288
    %v290 = vsel %vm140, %v288, %v287
    %293 = vrot.lane.b32.xlu0 %v289, 3
    %v294 = vpop.permute.xlu0 %293
    %295 = vrot.lane.b32.xlu0 %v290, 3
    %v296 = vpop.permute.xlu0 %295
    %v299 = vadd.f32 %v271, %v294
    %v300 = vadd.f32 %v272, %v296
    %v301 = vmul.f32 %v299, 0.036632847
    %v302 = vmul.f32 %v300, 0.036632847
    %305 = vrot.lane.b32.xlu0 %v301, 125
    %v306 = vpop.permute.xlu0 %305
    %307 = vrot.lane.b32.xlu0 %v302, 125
    %v308 = vpop.permute.xlu0 %307
    %v311 = vadd.f32 %v285, %v306
    %v312 = vadd.f32 %v286, %v308
    %v313 = vrot.slane %v276, 1
    %v314 = vrot.slane %v278, 1
    %v315 = vsel %vm167, %v313, %v314
    %v316 = vsel %vm167, %v314, %v313
    %v317 = vrot.slane %v276, 5
    %v318 = vrot.slane %v278, 5
    %v319 = vsel %vm172, %v317, %v318
    %v320 = vsel %vm172, %v318, %v317
    %v321 = vadd.f32 %v315, %v319
    %v322 = vadd.f32 %v316, %v320
    %v323 = vmul.f32 %v321, 0.11128076
    %v324 = vmul.f32 %v322, 0.11128076
    %v325 = vadd.f32 %v311, %v323
    %v326 = vadd.f32 %v312, %v324
    %v327 = vrot.slane %v276, 2
    %v328 = vrot.slane %v278, 2
    %v329 = vsel %vm183, %v327, %v328
    %v330 = vsel %vm183, %v328, %v327
    %v331 = vrot.slane %v276, 4
    %v332 = vrot.slane %v278, 4
    %v333 = vsel %vm188, %v331, %v332
    %v334 = vsel %vm188, %v332, %v331
    %v335 = vadd.f32 %v329, %v333
    %v336 = vadd.f32 %v330, %v334
    %v337 = vmul.f32 %v335, 0.21674532
    %v338 = vmul.f32 %v336, 0.21674532
    %v339 = vadd.f32 %v325, %v337
    %v340 = vadd.f32 %v326, %v338
    %v341 = vmul.f32 %v40, %v40
    %v342 = vmul.f32 %v41, %v41
    %343 = vrot.lane.b32.xlu0 %v341, 96
    %v344 = vpop.permute.xlu0 %343
    %v345 = vsel %vm44, %v344, %v341
    %346 = vrot.lane.b32.xlu0 %v342, 96
    %v347 = vpop.permute.xlu0 %346
    %v348 = vsel %vm44, %v347, %v342
    %349 = vrot.lane.b32.xlu0 %v345, 96
    %v350 = vpop.permute.xlu0 %349
    %351 = vrot.lane.b32.xlu0 %v348, 96
    %v352 = vpop.permute.xlu0 %351
    %v353 = vsel %vm44, %v350, %v341
    %v354 = vsel %vm44, %v352, %v342
    %v355 = vmul.f32 %v353, 0.27068216
    %v356 = vmul.f32 %v354, 0.27068216
    %359 = vrot.lane.b32.xlu0 %v353, 122
    %v360 = vpop.permute.xlu0 %359
    %361 = vrot.lane.b32.xlu0 %v354, 122
    %v362 = vpop.permute.xlu0 %361
    %v365 = vadd.f32 %v341, %v360
    %v366 = vadd.f32 %v342, %v362
    %v367 = vmul.f32 %v365, 0.036632847
    %v368 = vmul.f32 %v366, 0.036632847
    %371 = vrot.lane.b32.xlu0 %v367, 3
    %v372 = vpop.permute.xlu0 %371
    %373 = vrot.lane.b32.xlu0 %v368, 3
    %v374 = vpop.permute.xlu0 %373
    %v377 = vadd.f32 %v355, %v372
    %v378 = vadd.f32 %v356, %v374
    %379 = vrot.lane.b32.xlu0 %v353, 124
    %v380 = vpop.permute.xlu0 %379
    %381 = vrot.lane.b32.xlu0 %v354, 124
    %v382 = vpop.permute.xlu0 %381
    %v385 = vadd.f32 %v353, %v380
    %v386 = vadd.f32 %v354, %v382
    %v387 = vmul.f32 %v385, 0.11128076
    %v388 = vmul.f32 %v386, 0.11128076
    %391 = vrot.lane.b32.xlu0 %v387, 2
    %v392 = vpop.permute.xlu0 %391
    %393 = vrot.lane.b32.xlu0 %v388, 2
    %v394 = vpop.permute.xlu0 %393
    %v397 = vadd.f32 %v377, %v392
    %v398 = vadd.f32 %v378, %v394
    %399 = vrot.lane.b32.xlu0 %v353, 126
    %v400 = vpop.permute.xlu0 %399
    %401 = vrot.lane.b32.xlu0 %v354, 126
    %v402 = vpop.permute.xlu0 %401
    %v405 = vadd.f32 %v353, %v400
    %v406 = vadd.f32 %v354, %v402
    %v407 = vmul.f32 %v405, 0.21674532
    %v408 = vmul.f32 %v406, 0.21674532
    %411 = vrot.lane.b32.xlu0 %v407, 1
    %v412 = vpop.permute.xlu0 %411
    %413 = vrot.lane.b32.xlu0 %v408, 1
    %v414 = vpop.permute.xlu0 %413
    %v417 = vadd.f32 %v397, %v412
    %v418 = vadd.f32 %v398, %v414
    %421 = vrot.lane.b32.xlu0 %v417, 125
    %v422 = vpop.permute.xlu0 %421
    %423 = vrot.lane.b32.xlu0 %v418, 125
    %v424 = vpop.permute.xlu0 %423
    %v427 = vrot.slane %v422, 3
    %v428 = vrot.slane %v424, 3
    %v429 = vsel %vm133, %v427, %v428
    %v430 = vsel %vm133, %v428, %v427
    %v431 = vmul.f32 %v429, 0.27068216
    %v432 = vmul.f32 %v430, 0.27068216
    %v433 = vrot.slane %v422, 6
    %v434 = vrot.slane %v424, 6
    %v435 = vsel %vm140, %v433, %v434
    %v436 = vsel %vm140, %v434, %v433
    %439 = vrot.lane.b32.xlu0 %v435, 3
    %v440 = vpop.permute.xlu0 %439
    %441 = vrot.lane.b32.xlu0 %v436, 3
    %v442 = vpop.permute.xlu0 %441
    %v445 = vadd.f32 %v417, %v440
    %v446 = vadd.f32 %v418, %v442
    %v447 = vmul.f32 %v445, 0.036632847
    %v448 = vmul.f32 %v446, 0.036632847
    %451 = vrot.lane.b32.xlu0 %v447, 125
    %v452 = vpop.permute.xlu0 %451
    %453 = vrot.lane.b32.xlu0 %v448, 125
    %v454 = vpop.permute.xlu0 %453
    %v457 = vadd.f32 %v431, %v452
    %v458 = vadd.f32 %v432, %v454
    %v459 = vrot.slane %v422, 1
    %v460 = vrot.slane %v424, 1
    %v461 = vsel %vm167, %v459, %v460
    %v462 = vsel %vm167, %v460, %v459
    %v463 = vrot.slane %v422, 5
    %v464 = vrot.slane %v424, 5
    %v465 = vsel %vm172, %v463, %v464
    %v466 = vsel %vm172, %v464, %v463
    %v467 = vadd.f32 %v461, %v465
    %v468 = vadd.f32 %v462, %v466
    %v469 = vmul.f32 %v467, 0.11128076
    %v470 = vmul.f32 %v468, 0.11128076
    %v471 = vadd.f32 %v457, %v469
    %v472 = vadd.f32 %v458, %v470
    %v473 = vrot.slane %v422, 2
    %v474 = vrot.slane %v424, 2
    %v475 = vsel %vm183, %v473, %v474
    %v476 = vsel %vm183, %v474, %v473
    %v477 = vrot.slane %v422, 4
    %v478 = vrot.slane %v424, 4
    %v479 = vsel %vm188, %v477, %v478
    %v480 = vsel %vm188, %v478, %v477
    %v481 = vadd.f32 %v475, %v479
    %v482 = vadd.f32 %v476, %v480
    %v483 = vmul.f32 %v481, 0.21674532
    %v484 = vmul.f32 %v482, 0.21674532
    %v485 = vadd.f32 %v471, %v483
    %v486 = vadd.f32 %v472, %v484
    %v487 = vmul.f32 %v42, %v42
    %v488 = vmul.f32 %v43, %v43
    %489 = vrot.lane.b32.xlu0 %v487, 96
    %v490 = vpop.permute.xlu0 %489
    %v491 = vsel %vm44, %v490, %v487
    %492 = vrot.lane.b32.xlu0 %v488, 96
    %v493 = vpop.permute.xlu0 %492
    %v494 = vsel %vm44, %v493, %v488
    %495 = vrot.lane.b32.xlu0 %v491, 96
    %v496 = vpop.permute.xlu0 %495
    %497 = vrot.lane.b32.xlu0 %v494, 96
    %v498 = vpop.permute.xlu0 %497
    %v499 = vsel %vm44, %v496, %v487
    %v500 = vsel %vm44, %v498, %v488
    %v501 = vmul.f32 %v499, 0.27068216
    %v502 = vmul.f32 %v500, 0.27068216
    %505 = vrot.lane.b32.xlu0 %v499, 122
    %v506 = vpop.permute.xlu0 %505
    %507 = vrot.lane.b32.xlu0 %v500, 122
    %v508 = vpop.permute.xlu0 %507
    %v511 = vadd.f32 %v487, %v506
    %v512 = vadd.f32 %v488, %v508
    %v513 = vmul.f32 %v511, 0.036632847
    %v514 = vmul.f32 %v512, 0.036632847
    %517 = vrot.lane.b32.xlu0 %v513, 3
    %v518 = vpop.permute.xlu0 %517
    %519 = vrot.lane.b32.xlu0 %v514, 3
    %v520 = vpop.permute.xlu0 %519
    %v523 = vadd.f32 %v501, %v518
    %v524 = vadd.f32 %v502, %v520
    %525 = vrot.lane.b32.xlu0 %v499, 124
    %v526 = vpop.permute.xlu0 %525
    %527 = vrot.lane.b32.xlu0 %v500, 124
    %v528 = vpop.permute.xlu0 %527
    %v531 = vadd.f32 %v499, %v526
    %v532 = vadd.f32 %v500, %v528
    %v533 = vmul.f32 %v531, 0.11128076
    %v534 = vmul.f32 %v532, 0.11128076
    %537 = vrot.lane.b32.xlu0 %v533, 2
    %v538 = vpop.permute.xlu0 %537
    %539 = vrot.lane.b32.xlu0 %v534, 2
    %v540 = vpop.permute.xlu0 %539
    %v543 = vadd.f32 %v523, %v538
    %v544 = vadd.f32 %v524, %v540
    %545 = vrot.lane.b32.xlu0 %v499, 126
    %v546 = vpop.permute.xlu0 %545
    %547 = vrot.lane.b32.xlu0 %v500, 126
    %v548 = vpop.permute.xlu0 %547
    %v551 = vadd.f32 %v499, %v546
    %v552 = vadd.f32 %v500, %v548
    %v553 = vmul.f32 %v551, 0.21674532
    %v554 = vmul.f32 %v552, 0.21674532
    %557 = vrot.lane.b32.xlu0 %v553, 1
    %v558 = vpop.permute.xlu0 %557
    %559 = vrot.lane.b32.xlu0 %v554, 1
    %v560 = vpop.permute.xlu0 %559
    %v563 = vadd.f32 %v543, %v558
    %v564 = vadd.f32 %v544, %v560
    %567 = vrot.lane.b32.xlu0 %v563, 125
    %v568 = vpop.permute.xlu0 %567
    %569 = vrot.lane.b32.xlu0 %v564, 125
    %v570 = vpop.permute.xlu0 %569
    %v573 = vrot.slane %v568, 3
    %v574 = vrot.slane %v570, 3
    %v575 = vsel %vm133, %v573, %v574
    %v576 = vsel %vm133, %v574, %v573
    %v577 = vmul.f32 %v575, 0.27068216
    %v578 = vmul.f32 %v576, 0.27068216
    %v579 = vrot.slane %v568, 6
    %v580 = vrot.slane %v570, 6
    %v581 = vsel %vm140, %v579, %v580
    %v582 = vsel %vm140, %v580, %v579
    %585 = vrot.lane.b32.xlu0 %v581, 3
    %v586 = vpop.permute.xlu0 %585
    %587 = vrot.lane.b32.xlu0 %v582, 3
    %v588 = vpop.permute.xlu0 %587
    %v591 = vadd.f32 %v563, %v586
    %v592 = vadd.f32 %v564, %v588
    %v593 = vmul.f32 %v591, 0.036632847
    %v594 = vmul.f32 %v592, 0.036632847
    %597 = vrot.lane.b32.xlu0 %v593, 125
    %v598 = vpop.permute.xlu0 %597
    %599 = vrot.lane.b32.xlu0 %v594, 125
    %v600 = vpop.permute.xlu0 %599
    %v603 = vadd.f32 %v577, %v598
    %v604 = vadd.f32 %v578, %v600
    %v605 = vrot.slane %v568, 1
    %v606 = vrot.slane %v570, 1
    %v607 = vsel %vm167, %v605, %v606
    %v608 = vsel %vm167, %v606, %v605
    %v609 = vrot.slane %v568, 5
    %v610 = vrot.slane %v570, 5
    %v611 = vsel %vm172, %v609, %v610
    %v612 = vsel %vm172, %v610, %v609
    %v613 = vadd.f32 %v607, %v611
    %v614 = vadd.f32 %v608, %v612
    %v615 = vmul.f32 %v613, 0.11128076
    %v616 = vmul.f32 %v614, 0.11128076
    %v617 = vadd.f32 %v603, %v615
    %v618 = vadd.f32 %v604, %v616
    %v619 = vrot.slane %v568, 2
    %v620 = vrot.slane %v570, 2
    %v621 = vsel %vm183, %v619, %v620
    %v622 = vsel %vm183, %v620, %v619
    %v623 = vrot.slane %v568, 4
    %v624 = vrot.slane %v570, 4
    %v625 = vsel %vm188, %v623, %v624
    %v626 = vsel %vm188, %v624, %v623
    %v627 = vadd.f32 %v621, %v625
    %v628 = vadd.f32 %v622, %v626
    %v629 = vmul.f32 %v627, 0.21674532
    %v630 = vmul.f32 %v628, 0.21674532
    %v631 = vadd.f32 %v617, %v629
    %v632 = vadd.f32 %v618, %v630
    %v633 = vmul.f32 %v40, %v42
    %v634 = vmul.f32 %v41, %v43
    %635 = vrot.lane.b32.xlu0 %v633, 96
    %v636 = vpop.permute.xlu0 %635
    %v637 = vsel %vm44, %v636, %v633
    %638 = vrot.lane.b32.xlu0 %v634, 96
    %v639 = vpop.permute.xlu0 %638
    %v640 = vsel %vm44, %v639, %v634
    %641 = vrot.lane.b32.xlu0 %v637, 96
    %v642 = vpop.permute.xlu0 %641
    %643 = vrot.lane.b32.xlu0 %v640, 96
    %v644 = vpop.permute.xlu0 %643
    %v645 = vsel %vm44, %v642, %v633
    %v646 = vsel %vm44, %v644, %v634
    %v647 = vmul.f32 %v645, 0.27068216
    %v648 = vmul.f32 %v646, 0.27068216
    %651 = vrot.lane.b32.xlu0 %v645, 122
    %v652 = vpop.permute.xlu0 %651
    %653 = vrot.lane.b32.xlu0 %v646, 122
    %v654 = vpop.permute.xlu0 %653
    %v657 = vadd.f32 %v633, %v652
    %v658 = vadd.f32 %v634, %v654
    %v659 = vmul.f32 %v657, 0.036632847
    %v660 = vmul.f32 %v658, 0.036632847
    %663 = vrot.lane.b32.xlu0 %v659, 3
    %v664 = vpop.permute.xlu0 %663
    %665 = vrot.lane.b32.xlu0 %v660, 3
    %v666 = vpop.permute.xlu0 %665
    %v669 = vadd.f32 %v647, %v664
    %v670 = vadd.f32 %v648, %v666
    %671 = vrot.lane.b32.xlu0 %v645, 124
    %v672 = vpop.permute.xlu0 %671
    %673 = vrot.lane.b32.xlu0 %v646, 124
    %v674 = vpop.permute.xlu0 %673
    %v677 = vadd.f32 %v645, %v672
    %v678 = vadd.f32 %v646, %v674
    %v679 = vmul.f32 %v677, 0.11128076
    %v680 = vmul.f32 %v678, 0.11128076
    %683 = vrot.lane.b32.xlu0 %v679, 2
    %v684 = vpop.permute.xlu0 %683
    %685 = vrot.lane.b32.xlu0 %v680, 2
    %v686 = vpop.permute.xlu0 %685
    %v689 = vadd.f32 %v669, %v684
    %v690 = vadd.f32 %v670, %v686
    %691 = vrot.lane.b32.xlu0 %v645, 126
    %v692 = vpop.permute.xlu0 %691
    %693 = vrot.lane.b32.xlu0 %v646, 126
    %v694 = vpop.permute.xlu0 %693
    %v697 = vadd.f32 %v645, %v692
    %v698 = vadd.f32 %v646, %v694
    %v699 = vmul.f32 %v697, 0.21674532
    %v700 = vmul.f32 %v698, 0.21674532
    %703 = vrot.lane.b32.xlu0 %v699, 1
    %v704 = vpop.permute.xlu0 %703
    %705 = vrot.lane.b32.xlu0 %v700, 1
    %v706 = vpop.permute.xlu0 %705
    %v709 = vadd.f32 %v689, %v704
    %v710 = vadd.f32 %v690, %v706
    %713 = vrot.lane.b32.xlu0 %v709, 125
    %v714 = vpop.permute.xlu0 %713
    %715 = vrot.lane.b32.xlu0 %v710, 125
    %v716 = vpop.permute.xlu0 %715
    %v719 = vrot.slane %v714, 3
    %v720 = vrot.slane %v716, 3
    %v721 = vsel %vm133, %v719, %v720
    %v722 = vsel %vm133, %v720, %v719
    %v723 = vmul.f32 %v721, 0.27068216
    %v724 = vmul.f32 %v722, 0.27068216
    %v725 = vrot.slane %v714, 6
    %v726 = vrot.slane %v716, 6
    %v727 = vsel %vm140, %v725, %v726
    %v728 = vsel %vm140, %v726, %v725
    %731 = vrot.lane.b32.xlu0 %v727, 3
    %v732 = vpop.permute.xlu0 %731
    %733 = vrot.lane.b32.xlu0 %v728, 3
    %v734 = vpop.permute.xlu0 %733
    %v737 = vadd.f32 %v709, %v732
    %v738 = vadd.f32 %v710, %v734
    %v739 = vmul.f32 %v737, 0.036632847
    %v740 = vmul.f32 %v738, 0.036632847
    %743 = vrot.lane.b32.xlu0 %v739, 125
    %v744 = vpop.permute.xlu0 %743
    %745 = vrot.lane.b32.xlu0 %v740, 125
    %v746 = vpop.permute.xlu0 %745
    %v749 = vadd.f32 %v723, %v744
    %v750 = vadd.f32 %v724, %v746
    %v751 = vrot.slane %v714, 1
    %v752 = vrot.slane %v716, 1
    %v753 = vsel %vm167, %v751, %v752
    %v754 = vsel %vm167, %v752, %v751
    %v755 = vrot.slane %v714, 5
    %v756 = vrot.slane %v716, 5
    %v757 = vsel %vm172, %v755, %v756
    %v758 = vsel %vm172, %v756, %v755
    %v759 = vadd.f32 %v753, %v757
    %v760 = vadd.f32 %v754, %v758
    %v761 = vmul.f32 %v759, 0.11128076
    %v762 = vmul.f32 %v760, 0.11128076
    %v763 = vadd.f32 %v749, %v761
    %v764 = vadd.f32 %v750, %v762
    %v765 = vrot.slane %v714, 2
    %v766 = vrot.slane %v716, 2
    %v767 = vsel %vm183, %v765, %v766
    %v768 = vsel %vm183, %v766, %v765
    %v769 = vrot.slane %v714, 4
    %v770 = vrot.slane %v716, 4
    %v771 = vsel %vm188, %v769, %v770
    %v772 = vsel %vm188, %v770, %v769
    %v773 = vadd.f32 %v767, %v771
    %v774 = vadd.f32 %v768, %v772
    %v775 = vmul.f32 %v773, 0.21674532
    %v776 = vmul.f32 %v774, 0.21674532
    %v777 = vadd.f32 %v763, %v775
    %v778 = vadd.f32 %v764, %v776
    %v779 = vmul.f32 %v195, %v195
    %v780 = vmul.f32 %v196, %v196
    %v781 = vmul.f32 %v339, %v339
    %v782 = vmul.f32 %v340, %v340
    %v783 = vmul.f32 %v195, %v339
    %v784 = vmul.f32 %v196, %v340
    %v785 = vsub.f32 %v485, %v779
    %v786 = vsub.f32 %v486, %v780
    %v787 = vsub.f32 %v631, %v781
    %v788 = vsub.f32 %v632, %v782
    %v789 = vsub.f32 %v777, %v783
    %v790 = vsub.f32 %v778, %v784
    %v791 = vmul.f32 %v783, 2.0
    %v792 = vmul.f32 %v784, 2.0
    %v793 = vadd.f32 %v791, 0.0001
    %v794 = vadd.f32 %v792, 0.0001
    %v795 = vmul.f32 %v789, 2.0
    %v796 = vmul.f32 %v790, 2.0
    %v797 = vadd.f32 %v795, 0.0009
    %v798 = vadd.f32 %v796, 0.0009
    %v799 = vmul.f32 %v793, %v797
    %v800 = vmul.f32 %v794, %v798
    %v801 = vadd.f32 %v779, %v781
    %v802 = vadd.f32 %v780, %v782
    %v803 = vadd.f32 %v801, 0.0001
    %v804 = vadd.f32 %v802, 0.0001
    %v805 = vadd.f32 %v785, %v787
    %v806 = vadd.f32 %v786, %v788
    %v807 = vadd.f32 %v805, 0.0009
    %v808 = vadd.f32 %v806, 0.0009
    %v809 = vmul.f32 %v803, %v807
    %v810 = vmul.f32 %v804, %v808
    %v811 = vrcp.pop %v809
    %v812 = vmul.f32 %v799, %v811
    %v813 = vrcp.pop %v810
    %v814 = vmul.f32 %v800, %v813
    %v815 = vadd.s32 %v132, 8
    %v816 = vlaneseq
    %v817 = vand.u32 %v816, 127
    %vm818 = vcmp.lt.s32.totalorder %v132, 10
    %vm819 = vcmp.lt.s32.totalorder %v815, 10
    %vm820 = vcmp.lt.s32.totalorder %v817, 0
    %v821 = vsub.s32 0, %v817
    %v822 = vsel %vm820, %v821, %v817
    %v823 = vshrl.u32 %v822, 4
    %v824 = vand.u32 %v822, 15
    %v825 = vsub.s32 0, %v824
    %v826 = vsel %vm820, %v825, %v824
    %vm827 = vcmp.ne.s32.totalorder %v826, 0
    %vm828 = vcmp.lt.s32.totalorder %v826, 0
    %vm829 = vmand %vm828, %vm827
    %v830 = vadd.s32 %v826, 16
    %v831 = vsel %vm829, %v830, %v826
    %vm832 = vcmp.lt.s32.totalorder %v831, 10
    %vm833 = vmand %vm818, %vm832
    %vm834 = vmand %vm819, %vm832
    %v835 = vsel %vm833, %v812, 0.0
    %v836 = vsel %vm834, %v814, 0.0
    %vm837 = vcmask 785408
    %v838 = vsel %vm837, %v835, 0.0
    %v839 = vsel %vm837, %v836, 0.0
    %v840 = vadd.f32 %v838, %v839
    %841 = vadd.xlane.f32.xlu0 %v840
    %v842 = vpop.xlane.xlu0 %841
    %v843 = vrot.slane %v842, 4
    %v844 = vadd.f32 %v842, %v843
    %v845 = vrot.slane %v844, 2
    %v846 = vadd.f32 %v844, %v845
    %v847 = vrot.slane %v846, 1
    %v848 = vadd.f32 %v846, %v847
    %s849 = vtos %v848
    %s850 = smul.f32 %s849, 0.0016666667
    %v851 = vstv %s850
    %852 = vst [vmem:[#allocation7] sm:$0xff] %v851
    // Predicated region
    $region18: #{tpu_custom_call.1} parent=1 // pred_check
      _
    $region19: #{tpu_custom_call.1} parent=1 // pred_check_branch
      %854 = sbr.rel (0) target = $region21
    $region20: #{tpu_custom_call.1} parent=1 // pred_region
      %s856 = ssub.s32 128, 128
      %857 = vsyncadd [#allocation4], %s856
      %s859 = sshll.u32 [#allocation7], 4
      %s860 = int_to_ptr.vmem [resolvable:$true] %s859
      %862 = dma.vmem_to_hbm [thread:$0]  %s860, 128, %s2, [#allocation4]
    $region21: #{tpu_custom_call.1} parent=1 // pred_fallthru
      _
    // Predicated region
    $region22: #{tpu_custom_call.1} parent=1 // pred_check
      _
    $region23: #{tpu_custom_call.1} parent=1 // pred_check_branch
      %864 = sbr.rel (0) target = $region25
    $region24: #{tpu_custom_call.1} parent=1 // pred_region
      %865 = dma.done [#allocation4], 128
    $region25: #{tpu_custom_call.1} parent=1 // pred_fallthru
      _
    %866 = vsyncpa [#allocation3], 1
    %867 = vsyncpa [#allocation6], 1
    %868 = vsyncpa [#allocation4], 1

</llo_original>
